<compile_context>
chip_gen: v5e
topology: v5e:2x2
jax: 0.10.0
libtpu: 0.0.40
codegen_flags: <defaults>
</compile_context>

<pallas_src>
import functools

import jax
import jax.numpy as jnp
from jax import lax
from jax.experimental import pallas as pl
from jax.experimental.pallas import tpu as pltpu

_LANE = 128
_VMEM_TILE_TARGET = 14 * 1024 * 1024  # double-buffered inputs + scratch, all gens


def _round_up(x: int, m: int) -> int:
    return ((x + m - 1) // m) * m


def _compute_dtype_for(dtype):
    """Native bf16 compute on v6e/v7x; f32 upcast on v5x/older or other dtypes."""
    if dtype == jnp.float32:
        return jnp.float32
    if dtype == jnp.bfloat16:
        try:
            kind = jax.devices()[0].device_kind.lower()
        except Exception:
            kind = ""
        if ("v6" in kind) or ("v7" in kind):
            return jnp.bfloat16
        return jnp.float32
    return jnp.float32


def _pick_tiles(n: int, c: int, itemsize: int, pack: int):
    """Byte-budgeted row/class tiles, charging VMEM lane padding of every buffer."""
    c_pad = _round_up(c, _LANE)
    label_row = _LANE * 4                  # (tile_n, 1) int32, lane-padded
    scratch_row = 2 * _LANE * 4            # running max (f32) + argmax (int32)

    # Preferred: the full class extent in one block (no C tiling).
    per_row_full = 2 * (c_pad * itemsize + label_row) + scratch_row
    rows_full = (_VMEM_TILE_TARGET // per_row_full) // pack * pack

    if rows_full >= pack:
        tile_c = c
        tile_n = min(rows_full, _round_up(n, pack))
    else:
        # Vocab-scale C: tile the class axis too (second, "arbitrary" grid axis).
        tile_n = min(_round_up(n, pack), 256)
        fixed = tile_n * (2 * label_row + scratch_row)
        tile_c = ((_VMEM_TILE_TARGET - fixed) // (2 * tile_n * itemsize)) // _LANE * _LANE
        tile_c = int(min(max(tile_c, _LANE), c_pad))

    # v7x megacore: make sure the "parallel" row axis has >= 2 grid steps.
    if n > pack:
        tile_n = min(tile_n, max(pack, _round_up(-(-n // 2), pack)))
    return int(tile_n), int(tile_c)


def _accuracy_kernel(logits_ref, tgt_ref, cnt_ref, m_sc, idx_sc, *,
                     n_total: int, c_total: int, tile_n: int, tile_c: int,
                     compute_dtype):
    # logits_ref : (TILE_N, TILE_C) logits block, native dtype (VMEM)
    # tgt_ref    : (TILE_N, 1) int32 labels column (VMEM, resident across j)
    # cnt_ref    : (1, 1, 1) int32 partial correct-count for this row tile (VMEM)
    # m_sc       : (TILE_N, 1) f32  running row max (scratch)
    # idx_sc     : (TILE_N, 1) i32  running first-argmax index (scratch)
    i = pl.program_id(0)          # row-tile index   ("parallel")
    j = pl.program_id(1)          # class-tile index ("arbitrary" reduction)
    nj = pl.num_programs(1)

    x = logits_ref[...].astype(compute_dtype)                  # (tn, tc)
    tn, tc = x.shape

    # Global class indices covered by this block; mask lanes past the true C.
    lcol = lax.broadcasted_iota(jnp.int32, (tn, tc), 1)
    gcol = lcol + j * tile_c
    col_valid = gcol < c_total

    neg_inf = jnp.asarray(-jnp.inf, dtype=compute_dtype)
    xm = jnp.where(col_valid, x, neg_inf)

    # Block-local row max + first (smallest) column index attaining it.
    bmax = jnp.max(xm, axis=-1, keepdims=True)                  # (tn, 1)
    bidx = jnp.min(jnp.where((xm == bmax) & col_valid, gcol, jnp.int32(c_total)),
                   axis=-1, keepdims=True)                      # (tn, 1) int32
    bmax32 = bmax.astype(jnp.float32)

    @pl.when(j == 0)
    def _init():
        m_sc[...] = bmax32
        idx_sc[...] = bidx

    @pl.when(j > 0)
    def _merge():
        # Strict '>' keeps the earlier block on ties -> first-occurrence argmax.
        better = bmax32 > m_sc[...]
        m_sc[...] = jnp.where(better, bmax32, m_sc[...])
        idx_sc[...] = jnp.where(better, bidx, idx_sc[...])

    @pl.when(j == nj - 1)
    def _finalize():
        t = tgt_ref[...]                                        # (tn, 1) int32
        row = lax.broadcasted_iota(jnp.int32, (tn, 1), 0)
        row_valid = (i * tile_n + row) < n_total                # ragged last row tile
        correct = jnp.where(row_valid & (idx_sc[...] == t),
                            jnp.int32(1), jnp.int32(0))
        cnt_ref[...] = jnp.full((1, 1, 1), jnp.sum(correct), dtype=jnp.int32)


def accuracy(output: jax.Array, target: jax.Array, *,
             tile_n: int | None = None, tile_c: int | None = None) -> jax.Array:
    """output: [N, C] float (any float dtype), target: [N] int -> scalar f32 accuracy."""
    assert output.ndim == 2 and target.ndim == 1
    assert output.shape[0] == target.shape[0]
    n, c = output.shape
    itemsize = jnp.dtype(output.dtype).itemsize
    pack = {1: 32, 2: 16}.get(itemsize, 8)     # sublane packing of the logits dtype

    auto_n, auto_c = _pick_tiles(n, c, itemsize, pack)
    tn = _round_up(int(tile_n), pack) if tile_n is not None else auto_n
    tc = int(tile_c) if tile_c is not None else auto_c
    tn = min(tn, _round_up(n, pack))
    num_row_tiles = -(-n // tn)
    num_c_tiles = -(-c // tc)

    compute_dtype = _compute_dtype_for(output.dtype)
    tgt_2d = target.astype(jnp.int32).reshape(n, 1)

    # Explicit VMEM budget: double-buffered logits / labels / output blocks plus
    # the single-buffered running-(max, argmax) scratch, plus slack for Mosaic.
    logits_buf = tn * _round_up(tc, _LANE) * itemsize
    labels_buf = tn * _LANE * 4
    out_buf = 8 * _LANE * 4
    scratch_buf = 2 * tn * _LANE * 4
    vmem_limit = 2 * (logits_buf + labels_buf + out_buf) + scratch_buf + (4 << 20)
    vmem_limit = int(min(max(vmem_limit, 16 << 20), 64 << 20))

    kernel = functools.partial(
        _accuracy_kernel, n_total=n, c_total=c, tile_n=tn, tile_c=tc,
        compute_dtype=compute_dtype)

    partials = pl.pallas_call(
        kernel,
        out_shape=jax.ShapeDtypeStruct((num_row_tiles, 1, 1), jnp.int32),
        grid_spec=pltpu.PrefetchScalarGridSpec(
            num_scalar_prefetch=0,
            grid=(num_row_tiles, num_c_tiles),
            in_specs=[
                pl.BlockSpec((tn, tc), lambda i, j: (i, j)),   # logits, native dtype
                pl.BlockSpec((tn, 1), lambda i, j: (i, 0)),    # labels (resident over j)
            ],
            out_specs=pl.BlockSpec((1, 1, 1), lambda i, j: (i, 0, 0)),
            scratch_shapes=[
                pltpu.VMEM((tn, 1), jnp.float32),   # running row max
                pltpu.VMEM((tn, 1), jnp.int32),     # running first-argmax index
            ],
        ),
        compiler_params=pltpu.CompilerParams(
            dimension_semantics=("parallel", "arbitrary"),   # v7x: row tiles over 2 TCs
            vmem_limit_bytes=vmem_limit,
        ),
        cost_estimate=pl.CostEstimate(
            flops=5 * n * c,
            transcendentals=0,
            bytes_accessed=n * c * itemsize + n * 4 + num_row_tiles * 4,
        ),
    )(output, tgt_2d)

    # Exact int32 partial counts; divide by the true batch size N.
    count = jnp.sum(partials)
    return count.astype(jnp.float32) / jnp.float32(n)


if __name__ == "__main__":
    key = jax.random.PRNGKey(0)
    k1, k2, k3, k4 = jax.random.split(key, 4)

    # Small shapes consistent with the module: 20 samples, 32 classes.
    N, C = 20, 32
    output = jax.random.normal(k1, (N, C), dtype=jnp.float32)
    target = jax.random.randint(k2, (N,), 0, C, dtype=jnp.int32)
    ref = (jnp.sum(jnp.argmax(output, axis=-1) == target) / N).astype(jnp.float32)

    # Default auto-tiled path.
    acc = accuracy(output, target)
    jax.block_until_ready(acc)
    assert jnp.allclose(acc, ref), (acc, ref)

    # Forced multi-row-tile path with a ragged last tile (grid of 3 row tiles).
    acc_t = accuracy(output, target, tile_n=8)
    jax.block_until_ready(acc_t)
    assert jnp.allclose(acc_t, ref), (acc_t, ref)

    # Native bf16 logits: DMA stays bf16; compute dtype chosen per TPU generation.
    out_bf16 = output.astype(jnp.bfloat16)
    ref_bf16 = (jnp.sum(jnp.argmax(out_bf16, axis=-1) == target) / N).astype(jnp.float32)
    acc_b = accuracy(out_bf16, target)
    jax.block_until_ready(acc_b)
    assert jnp.allclose(acc_b, ref_bf16), (acc_b, ref_bf16)

    # Class-axis tiling path (2 C blocks), with a cross-block tie to verify the
    # running-merge keeps first-occurrence argmax semantics.
    N2, C2 = 24, 256
    out2 = jax.random.normal(k3, (N2, C2), dtype=jnp.float32)
    tgt2 = jax.random.randint(k4, (N2,), 0, C2, dtype=jnp.int32)
    out2 = out2.at[0, 17].set(100.0).at[0, 200].set(100.0)   # tie across C blocks
    out2 = out2.at[1, 130].set(50.0)                         # max lives in 2nd C block
    tgt2 = tgt2.at[0].set(17).at[1].set(130)
    ref2 = (jnp.sum(jnp.argmax(out2, axis=-1) == tgt2) / N2).astype(jnp.float32)
    acc2 = accuracy(out2, tgt2, tile_n=8, tile_c=128)
    jax.block_until_ready(acc2)
    assert jnp.allclose(acc2, ref2), (acc2, ref2)

    print("KERNEL_OK")
</pallas_src>

<mosaic_0001>
module attributes {stable_mosaic.version = 11 : i64} {
  func.func @_accuracy_kernel(%arg0: i32, %arg1: i32, %arg2: memref<16x32xf32, #tpu.memory_space<vmem>>, %arg3: memref<16x1xi32, #tpu.memory_space<vmem>>, %arg4: memref<1x1x1xi32, #tpu.memory_space<vmem>>, %arg5: memref<16x1xf32, #tpu.memory_space<vmem>>, %arg6: memref<16x1xi32, #tpu.memory_space<vmem>>) attributes {dimension_semantics = [#tpu.dimension_semantics<parallel>, #tpu.dimension_semantics<arbitrary>], iteration_bounds = array<i64: 2, 1>, scalar_prefetch = 0 : i64, scratch_operands = 2 : i64, tpu.core_type = #tpu.core_type<tc>, window_params = [{transform_indices = @transform_0, window_bounds = array<i64: 16, 32>}, {transform_indices = @transform_1, window_bounds = array<i64: 16, 1>}, {transform_indices = @transform_2, window_bounds = array<i64: 1, 1, 1>}]} {
    %c0 = arith.constant 0 : index
    %c0_0 = arith.constant 0 : index
    %0 = vector.load %arg2[%c0, %c0_0] : memref<16x32xf32, #tpu.memory_space<vmem>>, vector<16x32xf32>
    %1 = tpu.iota {dimensions = array<i32: 1>} : vector<16x32xi32>
    %c32_i32 = arith.constant 32 : i32
    %2 = arith.muli %arg1, %c32_i32 : i32
    %3 = vector.broadcast %2 : i32 to vector<16x32xi32>
    %4 = arith.addi %1, %3 : vector<16x32xi32>
    %c32_i32_1 = arith.constant 32 : i32
    %5 = vector.broadcast %c32_i32_1 : i32 to vector<16x32xi32>
    %6 = arith.cmpi slt, %4, %5 : vector<16x32xi32>
    %cst = arith.constant 0xFF800000 : f32
    %7 = vector.broadcast %cst : f32 to vector<16x32xf32>
    %8 = arith.select %6, %0, %7 : vector<16x32xi1>, vector<16x32xf32>
    %cst_2 = arith.constant dense<0xFF800000> : vector<16xf32>
    %9 = vector.multi_reduction <maximumf>, %8, %cst_2 [1] : vector<16x32xf32> to vector<16xf32>
    %10 = vector.shape_cast %9 : vector<16xf32> to vector<16x1xf32>
    %11 = vector.broadcast %10 : vector<16x1xf32> to vector<16x32xf32>
    %12 = arith.cmpf oeq, %8, %11 : vector<16x32xf32>
    %13 = arith.andi %12, %6 : vector<16x32xi1>
    %c32_i32_3 = arith.constant 32 : i32
    %14 = vector.broadcast %c32_i32_3 : i32 to vector<16x32xi32>
    %15 = arith.select %13, %4, %14 : vector<16x32xi1>, vector<16x32xi32>
    %cst_4 = arith.constant dense<2147483647> : vector<16xi32>
    %16 = vector.multi_reduction <minsi>, %15, %cst_4 [1] : vector<16x32xi32> to vector<16xi32>
    %17 = vector.shape_cast %16 : vector<16xi32> to vector<16x1xi32>
    %c0_i32 = arith.constant 0 : i32
    %18 = arith.cmpi eq, %arg1, %c0_i32 : i32
    %19 = arith.extui %18 : i1 to i32
    %c0_i32_5 = arith.constant 0 : i32
    %20 = arith.cmpi ne, %19, %c0_i32_5 : i32
    scf.if %20 {
      %c0_10 = arith.constant 0 : index
      %c0_11 = arith.constant 0 : index
      %27 = vector.load %arg5[%c0_10, %c0_11] : memref<16x1xf32, #tpu.memory_space<vmem>>, vector<16x1xf32>
      tpu.vector_store %arg5[%c0_10, %c0_11], %10 {strides = array<i32>} : memref<16x1xf32, #tpu.memory_space<vmem>>, vector<16x1xf32>,
      %c0_12 = arith.constant 0 : index
      %c0_13 = arith.constant 0 : index
      %28 = vector.load %arg6[%c0_12, %c0_13] : memref<16x1xi32, #tpu.memory_space<vmem>>, vector<16x1xi32>
      tpu.vector_store %arg6[%c0_12, %c0_13], %17 {strides = array<i32>} : memref<16x1xi32, #tpu.memory_space<vmem>>, vector<16x1xi32>,
    } else {
    }
    %c0_i32_6 = arith.constant 0 : i32
    %21 = arith.cmpi sgt, %arg1, %c0_i32_6 : i32
    %22 = arith.extui %21 : i1 to i32
    %c0_i32_7 = arith.constant 0 : i32
    %23 = arith.cmpi ne, %22, %c0_i32_7 : i32
    scf.if %23 {
      %c0_10 = arith.constant 0 : index
      %c0_11 = arith.constant 0 : index
      %27 = vector.load %arg5[%c0_10, %c0_11] : memref<16x1xf32, #tpu.memory_space<vmem>>, vector<16x1xf32>
      %28 = arith.cmpf ogt, %10, %27 : vector<16x1xf32>
      %c0_12 = arith.constant 0 : index
      %c0_13 = arith.constant 0 : index
      %29 = vector.load %arg5[%c0_12, %c0_13] : memref<16x1xf32, #tpu.memory_space<vmem>>, vector<16x1xf32>
      %30 = arith.select %28, %10, %29 : vector<16x1xi1>, vector<16x1xf32>
      %c0_14 = arith.constant 0 : index
      %c0_15 = arith.constant 0 : index
      %31 = vector.load %arg5[%c0_14, %c0_15] : memref<16x1xf32, #tpu.memory_space<vmem>>, vector<16x1xf32>
      tpu.vector_store %arg5[%c0_14, %c0_15], %30 {strides = array<i32>} : memref<16x1xf32, #tpu.memory_space<vmem>>, vector<16x1xf32>,
      %c0_16 = arith.constant 0 : index
      %c0_17 = arith.constant 0 : index
      %32 = vector.load %arg6[%c0_16, %c0_17] : memref<16x1xi32, #tpu.memory_space<vmem>>, vector<16x1xi32>
      %33 = arith.select %28, %17, %32 : vector<16x1xi1>, vector<16x1xi32>
      %c0_18 = arith.constant 0 : index
      %c0_19 = arith.constant 0 : index
      %34 = vector.load %arg6[%c0_18, %c0_19] : memref<16x1xi32, #tpu.memory_space<vmem>>, vector<16x1xi32>
      tpu.vector_store %arg6[%c0_18, %c0_19], %33 {strides = array<i32>} : memref<16x1xi32, #tpu.memory_space<vmem>>, vector<16x1xi32>,
    } else {
    }
    %c0_i32_8 = arith.constant 0 : i32
    %24 = arith.cmpi eq, %arg1, %c0_i32_8 : i32
    %25 = arith.extui %24 : i1 to i32
    %c0_i32_9 = arith.constant 0 : i32
    %26 = arith.cmpi ne, %25, %c0_i32_9 : i32
    scf.if %26 {
      %c0_10 = arith.constant 0 : index
      %c0_11 = arith.constant 0 : index
      %27 = vector.load %arg3[%c0_10, %c0_11] : memref<16x1xi32, #tpu.memory_space<vmem>>, vector<16x1xi32>
      %28 = tpu.iota {dimensions = array<i32: 0>} : vector<16x1xi32>
      %c16_i32 = arith.constant 16 : i32
      %29 = arith.muli %arg0, %c16_i32 : i32
      %30 = vector.broadcast %29 : i32 to vector<16x1xi32>
      %31 = arith.addi %30, %28 : vector<16x1xi32>
      %c20_i32 = arith.constant 20 : i32
      %32 = vector.broadcast %c20_i32 : i32 to vector<16x1xi32>
      %33 = arith.cmpi slt, %31, %32 : vector<16x1xi32>
      %c0_12 = arith.constant 0 : index
      %c0_13 = arith.constant 0 : index
      %34 = vector.load %arg6[%c0_12, %c0_13] : memref<16x1xi32, #tpu.memory_space<vmem>>, vector<16x1xi32>
      %35 = arith.cmpi eq, %34, %27 : vector<16x1xi32>
      %36 = arith.andi %33, %35 : vector<16x1xi1>
      %c1_i32 = arith.constant 1 : i32
      %c0_i32_14 = arith.constant 0 : i32
      %37 = vector.broadcast %c1_i32 : i32 to vector<16x1xi32>
      %38 = vector.broadcast %c0_i32_14 : i32 to vector<16x1xi32>
      %39 = arith.select %36, %37, %38 : vector<16x1xi1>, vector<16x1xi32>
      %40 = vector.shape_cast %39 : vector<16x1xi32> to vector<1x16x1xi32>
      %cst_15 = arith.constant dense<0> : vector<1xi32>
      %41 = vector.multi_reduction <add>, %40, %cst_15 [1, 2] : vector<1x16x1xi32> to vector<1xi32>
      %42 = vector.shape_cast %41 : vector<1xi32> to vector<1x1x1xi32>
      %43 = vector.extract %42[0, 0, 0] : i32 from vector<1x1x1xi32>
      %44 = vector.broadcast %43 : i32 to vector<1x1x1xi32>
      %c0_16 = arith.constant 0 : index
      %c0_17 = arith.constant 0 : index
      %c0_18 = arith.constant 0 : index
      %45 = vector.load %arg4[%c0_16, %c0_17, %c0_18] : memref<1x1x1xi32, #tpu.memory_space<vmem>>, vector<1x1x1xi32>
      tpu.vector_store %arg4[%c0_16, %c0_17, %c0_18], %44 {strides = array<i32>} : memref<1x1x1xi32, #tpu.memory_space<vmem>>, vector<1x1x1xi32>,
    } else {
    }
    return
  }
  func.func @transform_0(%arg0: i32, %arg1: i32) -> (i32, i32) {
    %c0_i32 = arith.constant 0 : i32
    return %arg0, %arg1 : i32, i32
  }
  func.func @transform_1(%arg0: i32, %arg1: i32) -> (i32, i32) {
    %c0_i32 = arith.constant 0 : i32
    %c0_i32_0 = arith.constant 0 : i32
    return %arg0, %c0_i32 : i32, i32
  }
  func.func @transform_2(%arg0: i32, %arg1: i32) -> (i32, i32, i32) {
    %c0_i32 = arith.constant 0 : i32
    %c0_i32_0 = arith.constant 0 : i32
    %c0_i32_1 = arith.constant 0 : i32
    return %arg0, %c0_i32, %c0_i32_0 : i32, i32, i32
  }
}

</mosaic_0001>

<llo_original>
// kernel: tpu_custom_call.1
$region0: #{tpu_custom_call.1}
  #allocation0 [shape = 'u32[]', space=smem, size = 0x4, offset = 0x4, fixed_abs, tag = 'smem constant byte address 0x4 - core index']
  #allocation1 [shape = 'u32[72,128]{1,0:T(1,128)}', space=vmem, size = 0x9000, scoped, tag = 'internal scratch']
  #allocation2 [shape = 'f32[16,1]{1,0:T(8,128)}', space=vmem, size = 0x2000, scoped, tag = 'scratch operand']
  #allocation3 [shape = 's32[16,1]{1,0:T(8,128)}', space=vmem, size = 0x2000, scoped, tag = 'scratch operand']
  %s0 = inlined_call_operand.vmem [shape: f32[20,32], index: 0, kind: input, shape index: {}]
  %s1 = inlined_call_operand.vmem [shape: s32[20,1], index: 1, kind: input, shape index: {}]
  %s2 = inlined_call_operand.vmem [shape: s32[2,1,1], index: 2, kind: output, shape index: {}]
  %s3 = sld [smem:[#allocation0]]
  $region53: #{tpu_custom_call.1} parent=0
    _
  %s5 = ssub.s32 1, %s3
  %s6 = scalar_select 0, %s5, %s3
  loop: start=0, step=1, limit=4
  $region2: #{tpu_custom_call.1} parent=0 // loop_pre_header
    _
  $region3: #{tpu_custom_call.1} parent=0 // loop_header
    %s8 = sphi 0, %s12
    %p9 = scmp.ge.s32.totalorder %s8, 4
    %s15 = sphi 0, %s27
    %s16 = sphi 0, %s23
    %s17 = sphi 0, %s15
    %s18 = sphi 0, %s16
    %s19 = sphi 0, %s17
    %s20 = sphi 0, %s18
    %s32 = sphi 0, %s34
    %s35 = sphi 0, %s32
    %s36 = sphi 0, %s35
    %s52 = sphi 0, %s36
    %s58 = sphi 0, %s60
    %s61 = sphi 0, %s58
    %s62 = sphi 0, %s61
    %s78 = sphi 0, %s62
    %s84 = sphi 0, %s86
    %s87 = sphi 0, %s84
    %s88 = sphi 0, %s87
    %s104 = sphi 0, %s88
  $region4: #{tpu_custom_call.1} parent=0 // loop_header_branch
    %11 = sbr.rel (%p9) target = $region8
  $region5: #{tpu_custom_call.1} parent=0 // loop_body
    %s13 = ssub.s32 %s8, 1
    %s14 = ssub.s32 %s8, 2
    %s21 = sadd.s32 1, %s16
    %p22 = scmp.ge.s32.totalorder %s21, 1
    %s23 = scalar_select %p22, 0, %s21
    %s24 = sadd.s32 1, %s15
    %s25 = scalar_select %p22, %s24, %s15
    %p26 = scmp.ge.s32.totalorder %s25, 2
    %s27 = scalar_select %p26, 0, %s25
    %s28 = ssub.s32 %s15, %s27
    %s29 = ssub.s32 %s16, %s23
    %s30 = sor.u32 %s28, %s29
    %p31 = scmp.eq.s32.totalorder %s30, 0
    %s33 = sadd.s32 %s32, 1
    %s34 = scalar_select %p31, %s32, %s33
    %p37 = pneg %p31
    %p38 = scmp.eq.s32.totalorder %s8, 1
    %p39 = por %p37, %p38
    %p40 = scmp.ne.s32.totalorder %s32, %s35
    %p41 = scmp.eq.s32.totalorder %s8, 0
    %p42 = por %p40, %p41
    %p43 = scmp.ne.s32.totalorder %s32, %s35
    %p44 = scmp.eq.s32.totalorder %s13, 1
    %p45 = por %p43, %p44
    %p46 = scmp.ne.s32.totalorder %s35, %s36
    %p47 = scmp.eq.s32.totalorder %s13, 0
    %p48 = por %p46, %p47
    %p49 = scmp.ne.s32.totalorder %s35, %s36
    %p50 = scmp.eq.s32.totalorder %s14, 1
    %p51 = por %p49, %p50
    %p53 = scmp.ne.s32.totalorder %s36, %s52
    %p54 = scmp.eq.s32.totalorder %s14, 0
    %p55 = por %p53, %p54
    %s56 = ssub.s32 %s15, %s27
    %p57 = scmp.eq.s32.totalorder %s56, 0
    %s59 = sadd.s32 %s58, 1
    %s60 = scalar_select %p57, %s58, %s59
    %p63 = pneg %p57
    %p64 = scmp.eq.s32.totalorder %s8, 1
    %p65 = por %p63, %p64
    %p66 = scmp.ne.s32.totalorder %s58, %s61
    %p67 = scmp.eq.s32.totalorder %s8, 0
    %p68 = por %p66, %p67
    %p69 = scmp.ne.s32.totalorder %s58, %s61
    %p70 = scmp.eq.s32.totalorder %s13, 1
    %p71 = por %p69, %p70
    %p72 = scmp.ne.s32.totalorder %s61, %s62
    %p73 = scmp.eq.s32.totalorder %s13, 0
    %p74 = por %p72, %p73
    %p75 = scmp.ne.s32.totalorder %s61, %s62
    %p76 = scmp.eq.s32.totalorder %s14, 1
    %p77 = por %p75, %p76
    %p79 = scmp.ne.s32.totalorder %s62, %s78
    %p80 = scmp.eq.s32.totalorder %s14, 0
    %p81 = por %p79, %p80
    %s82 = ssub.s32 %s15, %s27
    %p83 = scmp.eq.s32.totalorder %s82, 0
    %s85 = sadd.s32 %s84, 1
    %s86 = scalar_select %p83, %s84, %s85
    %p89 = pneg %p83
    %p90 = scmp.eq.s32.totalorder %s8, 1
    %p91 = por %p89, %p90
    %p92 = scmp.ne.s32.totalorder %s84, %s87
    %p93 = scmp.eq.s32.totalorder %s8, 0
    %p94 = por %p92, %p93
    %p95 = scmp.ne.s32.totalorder %s84, %s87
    %p96 = scmp.eq.s32.totalorder %s13, 1
    %p97 = por %p95, %p96
    %p98 = scmp.ne.s32.totalorder %s87, %s88
    %p99 = scmp.eq.s32.totalorder %s13, 0
    %p100 = por %p98, %p99
    %p101 = scmp.ne.s32.totalorder %s87, %s88
    %p102 = scmp.eq.s32.totalorder %s14, 1
    %p103 = por %p101, %p102
    %p105 = scmp.ne.s32.totalorder %s88, %s104
    %p106 = scmp.eq.s32.totalorder %s14, 0
    %p107 = por %p105, %p106
    %p108 = scmp.le.s32.totalorder 1, %s8
    %p109 = scmp.lt.s32.totalorder %s8, 3
    %p110 = pnand %p108, %p109
    %p111 = pneg %p110
    // Predicated region
    $region9: #{tpu_custom_call.1} parent=5 // pred_check
      _
    $region10: #{tpu_custom_call.1} parent=5 // pred_check_branch
      %113 = sbr.rel (%p110) target = $region12
    $region11: #{tpu_custom_call.1} parent=5 // pred_region
      %s114 = ssub.s32 %s8, 1
    $region12: #{tpu_custom_call.1} parent=5 // pred_fallthru
      _
    %p115 = scmp.lt.s32.totalorder %s8, 2
    // Predicated region
    $region13: #{tpu_custom_call.1} parent=5 // pred_check
      %p116 = pneg %p115
    $region14: #{tpu_custom_call.1} parent=5 // pred_check_branch
      %118 = sbr.rel (%p116) target = $region16
    $region15: #{tpu_custom_call.1} parent=5 // pred_region
      // Predicated region
      $region17: #{tpu_custom_call.1} parent=15 // pred_check
        %p119 = pneg %p42
      $region18: #{tpu_custom_call.1} parent=15 // pred_check_branch
        %121 = sbr.rel (%p119) target = $region20
      $region19: #{tpu_custom_call.1} parent=15 // pred_region
        %s122 = smul.u32 2, %s15
        %s123 = ssub.s32 3, %s122
        %p124 = scmp.lt.s32.totalorder %s123, 2
        %s125 = scalar_select %p124, %s123, 2
        %s126 = smul.u32 8, %s125
        %p127 = scmp.lt.s32.totalorder %s122, 2
        %s128 = scalar_select %p127, %s122, 2
        %p129 = scmp.lt.s32.totalorder %s16, 0
        %s130 = scalar_select %p129, %s16, 0
        %s131 = sadd.s32 %s130, %s128
        %s132 = smul.addr %s131, 8
        %s133 = scalar_lea.vmem %s0, %s132
        %s134 = smul.u32 2, %s15
        %s135 = ssub.s32 3, %s134
        %p136 = scmp.lt.s32.totalorder %s135, 2
        %s137 = scalar_select %p136, %s135, 2
        %s138 = smul.u32 8, %s137
      $region20: #{tpu_custom_call.1} parent=15 // pred_fallthru
        _
      // Predicated region
      $region21: #{tpu_custom_call.1} parent=15 // pred_check
        %p139 = pneg %p68
      $region22: #{tpu_custom_call.1} parent=15 // pred_check_branch
        %141 = sbr.rel (%p139) target = $region24
      $region23: #{tpu_custom_call.1} parent=15 // pred_region
        %s142 = smul.u32 2, %s15
        %s143 = ssub.s32 3, %s142
        %p144 = scmp.lt.s32.totalorder %s143, 2
        %s145 = scalar_select %p144, %s143, 2
        %s146 = smul.u32 8, %s145
        %p147 = scmp.lt.s32.totalorder %s142, 2
        %s148 = scalar_select %p147, %s142, 2
        %s149 = smul.addr %s148, 8
        %s150 = scalar_lea.vmem %s1, %s149
        %s151 = smul.u32 2, %s15
        %s152 = ssub.s32 3, %s151
        %p153 = scmp.lt.s32.totalorder %s152, 2
        %s154 = scalar_select %p153, %s152, 2
        %s155 = smul.u32 8, %s154
      $region24: #{tpu_custom_call.1} parent=15 // pred_fallthru
        _
    $region16: #{tpu_custom_call.1} parent=5 // pred_fallthru
      _
    %p156 = scmp.le.s32.totalorder 1, %s8
    %p157 = scmp.lt.s32.totalorder %s8, 3
    %p158 = pnand %p156, %p157
    %p159 = pneg %p158
    // Predicated region
    $region25: #{tpu_custom_call.1} parent=5 // pred_check
      _
    $region26: #{tpu_custom_call.1} parent=5 // pred_check_branch
      %161 = sbr.rel (%p158) target = $region28
    $region27: #{tpu_custom_call.1} parent=5 // pred_region
      %s162 = ssub.s32 %s8, 1
      %s163 = smul.u32 2, %s17
      %s164 = ssub.s32 3, %s163
      %p165 = scmp.lt.s32.totalorder %s164, 2
      %s166 = scalar_select %p165, %s164, 2
      %s167 = smul.u32 8, %s166
      %p168 = scmp.lt.s32.totalorder %s163, 2
      %s169 = scalar_select %p168, %s163, 2
      %p170 = scmp.lt.s32.totalorder %s18, 0
      %s171 = scalar_select %p170, %s18, 0
      %s172 = sadd.s32 %s171, %s169
      %s173 = smul.addr %s172, 8
      %s174 = scalar_lea.vmem %s0, %s173
      %p175 = pneg %p48
      %p176 = pneg %p45
      %s177 = smul.u32 2, %s17
      %s178 = ssub.s32 3, %s177
      %p179 = scmp.lt.s32.totalorder %s178, 2
      %s180 = scalar_select %p179, %s178, 2
      %s181 = smul.u32 8, %s180
      %p182 = scmp.lt.s32.totalorder %s177, 2
      %s183 = scalar_select %p182, %s177, 2
      %s184 = smul.addr %s183, 8
      %s185 = scalar_lea.vmem %s1, %s184
      %p186 = pneg %p74
      %p187 = pneg %p71
      %p188 = pneg %p100
      %p189 = pneg %p97
      %p190 = scmp.lt.s32.totalorder %s17, 1
      %s191 = scalar_select %p190, %s17, 1
      %s192 = scalar_lea.vmem %s2, %s191
      %s193 = smul.u32 2, %s17
      %s194 = ssub.s32 3, %s193
      %p195 = scmp.lt.s32.totalorder %s194, 2
      %s196 = scalar_select %p195, %s194, 2
      %s197 = smul.u32 8, %s196
      %p198 = scmp.lt.s32.totalorder %s193, 2
      %s199 = scalar_select %p198, %s193, 2
      %p200 = scmp.lt.s32.totalorder %s18, 0
      %s201 = scalar_select %p200, %s18, 0
      %s202 = sadd.s32 %s201, %s199
      %s203 = smul.addr %s202, 8
      %s204 = scalar_lea.vmem %s0, %s203
      %s205 = smul.u32 2, %s17
      %s206 = ssub.s32 3, %s205
      %p207 = scmp.lt.s32.totalorder %s206, 2
      %s208 = scalar_select %p207, %s206, 2
      %s209 = smul.u32 8, %s208
      %s210 = smul.u32 2, %s17
      %s211 = ssub.s32 3, %s210
      %p212 = scmp.lt.s32.totalorder %s211, 2
      %s213 = scalar_select %p212, %s211, 2
      %s214 = smul.u32 8, %s213
      %p215 = scmp.lt.s32.totalorder %s210, 2
      %s216 = scalar_select %p215, %s210, 2
      %s217 = smul.addr %s216, 8
      %s218 = scalar_lea.vmem %s1, %s217
      %s219 = smul.u32 2, %s17
      %s220 = ssub.s32 3, %s219
      %p221 = scmp.lt.s32.totalorder %s220, 2
      %s222 = scalar_select %p221, %s220, 2
      %s223 = smul.u32 8, %s222
      %p224 = scmp.lt.s32.totalorder %s17, 1
      %s225 = scalar_select %p224, %s17, 1
      %s226 = scalar_lea.vmem %s2, %s225
      %v227 = vld [vmem:[%s204] sm:$0xff]
      %v228 = vld [vmem:[%s204 + $0x8] sm:$0xff]
      %v229 = vlaneseq
      %v230 = vand.u32 %v229, 127
      %s231 = smul.u32 %s18, 32
      %v232 = vstv %s231
      %v233 = vadd.s32 %v230, %v232
      %vm234 = vcmp.lt.s32.totalorder %v233, 32
      %v235 = vsel %vm234, %v227, -inf
      %v236 = vsel %vm234, %v228, -inf
      %vm237 = vcmask 261120
      %v238 = vsel %vm237, %v235, -inf
      %239 = vmax.xlane.f32.xlu0 %v238
      %v240 = vpop.xlane.xlu0 %239
      %v241 = vsel %vm237, %v236, -inf
      %242 = vmax.xlane.f32.xlu0 %v241
      %v243 = vpop.xlane.xlu0 %242
      %vm244 = vcmp.eq.f32.partialorder %v235, %v240
      %vm245 = vcmp.eq.f32.partialorder %v236, %v243
      %vm246 = vmand %vm244, %vm234
      %vm247 = vmand %vm245, %vm234
      %v248 = vsel %vm246, %v233, 32
      %v249 = vsel %vm247, %v233, 32
      %v250 = vsel %vm237, %v248, 2147483647
      %v251 = vand.u32 %v250, 65535
      %v252 = vshra.s32 %v250, 16
      %v253 = vcvt.s32.f32 %v251
      %v254 = vcvt.s32.f32 %v252
      %255 = vmin.xlane.f32.xlu0 %v254
      %v256 = vpop.xlane.xlu0 %255
      %vm257 = vcmp.eq.f32.partialorder %v254, %v256
      %v258 = vsel %vm257, %v253, inf
      %259 = vmin.xlane.f32.xlu0 %v258
      %v260 = vpop.xlane.xlu0 %259
      %v261 = vcvt.f32.s32 %v260
      %v262 = vcvt.f32.s32 %v256
      %v263 = vshll.u32 %v262, 16
      %v264 = vadd.s32 %v263, %v261
      %v265 = vsel %vm237, %v249, 2147483647
      %v266 = vand.u32 %v265, 65535
      %v267 = vshra.s32 %v265, 16
      %v268 = vcvt.s32.f32 %v266
      %v269 = vcvt.s32.f32 %v267
      %270 = vmin.xlane.f32.xlu0 %v269
      %v271 = vpop.xlane.xlu0 %270
      %vm272 = vcmp.eq.f32.partialorder %v269, %v271
      %v273 = vsel %vm272, %v268, inf
      %274 = vmin.xlane.f32.xlu0 %v273
      %v275 = vpop.xlane.xlu0 %274
      %v276 = vcvt.f32.s32 %v275
      %v277 = vcvt.f32.s32 %v271
      %v278 = vshll.u32 %v277, 16
      %v279 = vadd.s32 %v278, %v276
      %p280 = scmp.eq.s32.totalorder %s18, 0
      // Predicated region
      $region29: #{tpu_custom_call.1} parent=27 // pred_check
        %p281 = pneg %p280
      $region30: #{tpu_custom_call.1} parent=27 // pred_check_branch
        %283 = sbr.rel (%p281) target = $region32
      $region31: #{tpu_custom_call.1} parent=27 // pred_region
        %vm284 = vcmask 7168
        %285 = vst.msk [vmem:[#allocation2] sm:$0xff] %vm284, %v240
        %286 = vst.msk [vmem:[#allocation2 + $0x8] sm:$0xff] %vm284, %v243
        %287 = vst.msk [vmem:[#allocation3] sm:$0xff] %vm284, %v264
        %288 = vst.msk [vmem:[#allocation3 + $0x8] sm:$0xff] %vm284, %v279
      $region32: #{tpu_custom_call.1} parent=27 // pred_fallthru
        _
      %p289 = scmp.gt.s32.totalorder %s18, 0
      // Predicated region
      $region33: #{tpu_custom_call.1} parent=27 // pred_check
        %p290 = pneg %p289
      $region34: #{tpu_custom_call.1} parent=27 // pred_check_branch
        %292 = sbr.rel (%p290) target = $region36
      $region35: #{tpu_custom_call.1} parent=27 // pred_region
        %v293 = vld [vmem:[#allocation2] sm:$0xff]
        %v294 = vld [vmem:[#allocation2 + $0x8] sm:$0xff]
        %vm295 = vcmp.gt.f32.partialorder %v240, %v293
        %vm296 = vcmp.gt.f32.partialorder %v243, %v294
        %v297 = vsel %vm295, %v240, %v293
        %v298 = vsel %vm296, %v243, %v294
        %vm299 = vcmask 7168
        %300 = vst.msk [vmem:[#allocation2] sm:$0xff] %vm299, %v297
        %301 = vst.msk [vmem:[#allocation2 + $0x8] sm:$0xff] %vm299, %v298
        %v302 = vld [vmem:[#allocation3] sm:$0xff]
        %v303 = vld [vmem:[#allocation3 + $0x8] sm:$0xff]
        %v304 = vsel %vm295, %v264, %v302
        %v305 = vsel %vm296, %v279, %v303
        %306 = vst.msk [vmem:[#allocation3] sm:$0xff] %vm299, %v304
        %307 = vst.msk [vmem:[#allocation3 + $0x8] sm:$0xff] %vm299, %v305
      $region36: #{tpu_custom_call.1} parent=27 // pred_fallthru
        _
      // Predicated region
      $region37: #{tpu_custom_call.1} parent=27 // pred_check
        %p308 = pneg %p280
      $region38: #{tpu_custom_call.1} parent=27 // pred_check_branch
        %310 = sbr.rel (%p308) target = $region40
      $region39: #{tpu_custom_call.1} parent=27 // pred_region
        %v311 = vld [vmem:[%s218] sm:$0xff]
        %v312 = vld [vmem:[%s218 + $0x8] sm:$0xff]
        %v313 = vlaneseq
        %v314 = vshrl.u32 %v313, 7
        %v315 = vadd.s32 %v314, 8
        %s316 = smul.u32 %s17, 16
        %v317 = vstv %s316
        %v318 = vadd.s32 %v317, %v314
        %v319 = vadd.s32 %v317, %v315
        %vm320 = vcmp.lt.s32.totalorder %v318, 20
        %vm321 = vcmp.lt.s32.totalorder %v319, 20
        %v322 = vld [vmem:[#allocation3] sm:$0xff]
        %v323 = vld [vmem:[#allocation3 + $0x8] sm:$0xff]
        %vm324 = vcmp.eq.s32.totalorder %v322, %v311
        %vm325 = vcmp.eq.s32.totalorder %v323, %v312
        %vm326 = vmand %vm320, %vm324
        %vm327 = vmand %vm321, %vm325
        %v328 = vsel %vm326, 1, 0
        %v329 = vsel %vm327, 1, 0
        %vm330 = vcmask 7168
        %v331 = vsel %vm330, %v328, 0
        %v332 = vsel %vm330, %v329, 0
        %v333 = vadd.s32 %v331, %v332
        %v334 = vand.u32 %v333, 65535
        %v335 = vshrl.u32 %v333, 16
        %v336 = vcvt.s32.f32 %v334
        %v337 = vcvt.s32.f32 %v335
        %338 = vadd.xlane.f32.xlu0 %v336
        %v339 = vpop.xlane.xlu0 %338
        %340 = vadd.xlane.f32.xlu0 %v337
        %v341 = vpop.xlane.xlu0 %340
        %v342 = vcvt.f32.s32 %v339
        %v343 = vcvt.f32.s32 %v341
        %v344 = vshll.u32 %v343, 16
        %v345 = vadd.s32 %v344, %v342
        %v346 = vrot.slane %v345, 4
        %v347 = vadd.s32 %v345, %v346
        %v348 = vrot.slane %v347, 2
        %v349 = vadd.s32 %v347, %v348
        %v350 = vrot.slane %v349, 1
        %v351 = vadd.s32 %v349, %v350
        %s352 = vtos %v351
        %v353 = vstv %s352
        %vm354 = vcmask 0
        %355 = vst.msk [vmem:[%s226] sm:$0x1] %vm354, %v353
      $region40: #{tpu_custom_call.1} parent=27 // pred_fallthru
        _
      %p356 = scmp.lt.s32.totalorder %s17, 1
      %s357 = scalar_select %p356, %s17, 1
      %s358 = scalar_lea.vmem %s2, %s357
      // Predicated region
      $region41: #{tpu_custom_call.1} parent=27 // pred_check
        %p359 = pneg %p97
      $region42: #{tpu_custom_call.1} parent=27 // pred_check_branch
        %361 = sbr.rel (%p359) target = $region44
      $region43: #{tpu_custom_call.1} parent=27 // pred_region
        _
      $region44: #{tpu_custom_call.1} parent=27 // pred_fallthru
        _
    $region28: #{tpu_custom_call.1} parent=5 // pred_fallthru
      _
    %p362 = scmp.le.s32.totalorder 2, %s8
    // Predicated region
    $region45: #{tpu_custom_call.1} parent=5 // pred_check
      %p363 = pneg %p362
    $region46: #{tpu_custom_call.1} parent=5 // pred_check_branch
      %365 = sbr.rel (%p363) target = $region48
    $region47: #{tpu_custom_call.1} parent=5 // pred_region
      %s366 = ssub.s32 %s8, 2
      // Predicated region
      $region49: #{tpu_custom_call.1} parent=47 // pred_check
        %p367 = pneg %p103
      $region50: #{tpu_custom_call.1} parent=47 // pred_check_branch
        %369 = sbr.rel (%p367) target = $region52
      $region51: #{tpu_custom_call.1} parent=47 // pred_region
        %p370 = scmp.lt.s32.totalorder %s19, 1
        %s371 = scalar_select %p370, %s19, 1
        %s372 = scalar_lea.vmem %s2, %s371
      $region52: #{tpu_custom_call.1} parent=47 // pred_fallthru
        _
    $region48: #{tpu_custom_call.1} parent=5 // pred_fallthru
      _
  $region6: #{tpu_custom_call.1} parent=0 // loop_footer
    %s12 = sadd.s32 1, %s8
  $region7: #{tpu_custom_call.1} parent=0 // loop_footer_branch
    %7 = sbr.rel target = $region3
  $region8: #{tpu_custom_call.1} parent=0 // loop_exit
    _

</llo_original>
